<compile_context>
chip_gen: v7x
topology: tpu7x:2x2x1
jax: 0.10.0
libtpu: 0.0.40
codegen_flags: <defaults>
</compile_context>

<pallas_src>
import math
import functools

import jax
import jax.numpy as jnp
from jax.experimental import pallas as pl
from jax.experimental.pallas import tpu as pltpu

_NEG_BIG = -1e30   # masks padded vocab columns out of the softmax statistics
_LANE = 128
_SUBLANE = 8


def _round_up(n, m):
    return ((n + m - 1) // m) * m


def _vmem_budget_bytes():
    """Per-generation scoped-VMEM budget with headroom for Mosaic scratch."""
    try:
        cap = int(pltpu.get_tpu_info().vmem_capacity_bytes)
    except Exception:
        cap = 64 * 1024 * 1024  # conservative (v7x per-TensorCore size)
    # ~48 MiB on v7x (64 MiB phys), ~102 MiB on v5e/v6e (128 MiB phys)
    return max(16 * 1024 * 1024, min(int(0.8 * cap), cap - (16 << 20)))


def _fused_generator_kernel(*refs, has_scale):
    """grid = (row_tiles, vocab_tiles); vocab axis is innermost ("arbitrary").

    The (tm, v_pad) log-prob slab stays resident in VMEM across the vocab axis:
    each step writes its (tm, tn) logits slice and updates the online
    log-sum-exp; the final step subtracts the LSE in place so the slab is
    written back to HBM exactly once.
    """
    if has_scale:
        x_ref, w_ref, b_ref, s_ref, o_ref, m_sc, l_sc = refs
    else:
        x_ref, w_ref, b_ref, o_ref, m_sc, l_sc = refs
        s_ref = None

    j = pl.program_id(1)

    @pl.when(j == 0)
    def _():
        m_sc[...] = jnp.full_like(m_sc, -jnp.inf)
        l_sc[...] = jnp.zeros_like(l_sc)

    # (tm, H) x (H, tn) -> (tm, tn); MXU with f32 accumulation.
    logits = jnp.dot(x_ref[...], w_ref[...], preferred_element_type=jnp.float32)
    if s_ref is not None:
        logits = logits * s_ref[...]       # fused fix_norm column scaling
    logits = logits + b_ref[...]           # padded columns carry bias = -1e30

    tn = logits.shape[-1]
    col0 = pl.multiple_of(j * tn, tn)
    o_ref[:, pl.ds(col0, tn)] = logits     # write slice of the resident slab

    # online log-sum-exp across vocab tiles
    m_prev = m_sc[...]
    m_new = jnp.maximum(m_prev, jnp.max(logits, axis=-1, keepdims=True))
    l_sc[...] = (l_sc[...] * jnp.exp(m_prev - m_new)
                 + jnp.sum(jnp.exp(logits - m_new), axis=-1, keepdims=True))
    m_sc[...] = m_new

    @pl.when(j == pl.num_programs(1) - 1)
    def _():
        # log_softmax = logits - logsumexp, applied in place before writeback.
        o_ref[...] = o_ref[...] - (m_sc[...] + jnp.log(l_sc[...]))


def prepare_generator_params(weight, bias, *, fix_norm=False):
    """One-time parameter prep, hoisted off the per-call hot path.

    Returns (w_t, b2d, s2d):
      w_t : [H, v_pad] bf16, pre-transposed (plain MKxKN matmul, no per-tile
            XLU transpose) and lane-padded.
      b2d : [1, v_pad] f32 bias; padded columns set to -1e30 (softmax mask).
      s2d : [1, v_pad] f32 1/||w_row|| when fix_norm, else None.
    """
    V, H = weight.shape
    v_pad = _round_up(V, _LANE)
    w32 = weight.astype(jnp.float32)

    w_t = jnp.pad(w32.T, ((0, 0), (0, v_pad - V))).astype(jnp.bfloat16)
    b2d = jnp.pad(bias.astype(jnp.float32), (0, v_pad - V),
                  constant_values=_NEG_BIG).reshape(1, v_pad)
    if fix_norm:
        inv_norm = 1.0 / jnp.maximum(jnp.sqrt(jnp.sum(w32 * w32, axis=-1)),
                                     1e-12)
        s2d = jnp.pad(inv_norm, (0, v_pad - V)).reshape(1, v_pad)
    else:
        s2d = None
    return w_t, b2d, s2d


@functools.partial(jax.jit, static_argnames=("out_size", "fix_norm"))
def generator_forward(x, w_t, b2d, s2d, *, out_size, fix_norm):
    """x: [..., H]; prepared params from prepare_generator_params.

    Returns f32 log-probabilities [..., out_size].
    """
    H, v_pad = w_t.shape
    V = out_size
    lead = x.shape[:-1]
    x2d = x.reshape(-1, H)
    N = x2d.shape[0]

    # ---- tile selection (static at trace time) ----
    budget = _vmem_budget_bytes()

    # vocab tile: lane-dense, divides v_pad (v_pad is a multiple of 128).
    tn = min(1024, v_pad)
    while v_pad % tn:
        tn -= _LANE

    def vmem_est(tm):
        return (2 * tm * v_pad * 4        # resident log-prob slab (f32, 2 bufs)
                + 3 * tm * tn * 4         # logits/exp intermediates (slack)
                + 2 * tm * H * 2          # x tiles (bf16)
                + 2 * tn * H * 2          # weight tiles (bf16)
                + 4 * tn * 4              # bias (+ scale) tiles
                + 2 * tm * 4              # m/l scratch
                + (2 << 20))              # misc headroom

    tm = min(256, _round_up(N, _SUBLANE))
    while tm > _SUBLANE and vmem_est(tm) > budget:
        tm = max(_SUBLANE, _round_up(tm // 2, _SUBLANE))
    if vmem_est(tm) > budget:
        # TODO(synk): two-pass fallback (bf16 intermediate logits) for
        # vocabularies too large for a vocab-resident slab even at tm=8.
        raise ValueError("vocabulary too large for the fused single-pass path")

    n_pad = _round_up(N, tm)
    xc = x2d.astype(jnp.bfloat16)
    if n_pad != N:
        xc = jnp.pad(xc, ((0, n_pad - N), (0, 0)))

    grid = (n_pad // tm, v_pad // tn)

    in_specs = [
        pl.BlockSpec((tm, H), lambda i, j: (i, 0)),    # x rows
        pl.BlockSpec((H, tn), lambda i, j: (0, j)),    # weight [H, V]
        pl.BlockSpec((1, tn), lambda i, j: (0, j)),    # bias
    ]
    operands = [xc, w_t, b2d]
    if fix_norm:
        in_specs.append(pl.BlockSpec((1, tn), lambda i, j: (0, j)))
        operands.append(s2d)

    kernel = functools.partial(_fused_generator_kernel, has_scale=fix_norm)

    out = pl.pallas_call(
        kernel,
        out_shape=jax.ShapeDtypeStruct((n_pad, v_pad), jnp.float32),
        grid_spec=pltpu.PrefetchScalarGridSpec(
            num_scalar_prefetch=0,
            grid=grid,
            in_specs=in_specs,
            out_specs=pl.BlockSpec((tm, v_pad), lambda i, j: (i, 0)),
            scratch_shapes=[pltpu.VMEM((tm, 1), jnp.float32),
                            pltpu.VMEM((tm, 1), jnp.float32)],
        ),
        compiler_params=pltpu.CompilerParams(
            dimension_semantics=("parallel", "arbitrary"),
            vmem_limit_bytes=int(budget)),
    )(*operands)

    if n_pad != N or v_pad != V:
        # TODO(synk): masked-store ragged edge tiles to avoid this extra copy.
        out = out[:N, :V]
    return out.reshape(*lead, V)
    # TODO(synk): v7x decode (single row tile) could additionally shard the
    # vocab axis across the two TensorCores with a tiny cross-core combine.


# ---------------------------------------------------------------------------
# references
# ---------------------------------------------------------------------------
def _ref_forward_exact(x, weight, bias, fix_norm=False):
    """Mirrors the kernel numerics (bf16 matmul inputs, f32 accumulation,
    fix_norm applied as a post-matmul column scale)."""
    H = x.shape[-1]
    V = weight.shape[0]
    xf = x.astype(jnp.bfloat16).astype(jnp.float32).reshape(-1, H)
    wf = weight.astype(jnp.float32).T.astype(jnp.bfloat16).astype(jnp.float32)
    logits = xf @ wf
    if fix_norm:
        inv = 1.0 / jnp.maximum(
            jnp.sqrt(jnp.sum(weight.astype(jnp.float32) ** 2, axis=-1)), 1e-12)
        logits = logits * inv[None, :]
    logits = logits + bias.astype(jnp.float32)
    out = jax.nn.log_softmax(logits, axis=-1)
    return out.reshape(*x.shape[:-1], V)


def _ref_forward_f32(x, weight, bias, fix_norm=False):
    """Full-precision reference of the original module semantics."""
    w = weight.astype(jnp.float32)
    if fix_norm:
        w = w / jnp.maximum(
            jnp.sqrt(jnp.sum(w * w, axis=-1, keepdims=True)), 1e-12)
    logits = x.astype(jnp.float32) @ w.T + bias.astype(jnp.float32)
    return jax.nn.log_softmax(logits, axis=-1)


if __name__ == "__main__":
    # Small, module-consistent shapes: seq=8, batch=2, hidden=32, vocab=64
    seq, batch, hidden, vocab = 8, 2, 32, 64
    key = jax.random.PRNGKey(0)
    kx, kw = jax.random.split(key)

    # weight ~ U(-stdv, stdv) with stdv = 1/sqrt(hidden); bias = 0 (module init)
    stdv = 1.0 / math.sqrt(hidden)
    weight = jax.random.uniform(kw, (vocab, hidden), jnp.float32,
                                minval=-stdv, maxval=stdv)
    bias = jnp.zeros((vocab,), jnp.float32)

    # "output_dicts['hidden']" input
    x = jax.random.normal(kx, (seq, batch, hidden), jnp.float32)

    # ---- fix_norm = False ----
    w_t, b2d, s2d = prepare_generator_params(weight, bias, fix_norm=False)
    out = generator_forward(x, w_t, b2d, s2d, out_size=vocab, fix_norm=False)
    jax.block_until_ready(out)
    assert out.shape == (seq, batch, vocab)
    assert out.dtype == jnp.float32

    ref = _ref_forward_exact(x, weight, bias, fix_norm=False)
    assert jnp.max(jnp.abs(out - ref)) < 1e-3
    ref32 = _ref_forward_f32(x, weight, bias, fix_norm=False)
    assert jnp.max(jnp.abs(out - ref32)) < 5e-2  # bf16-matmul tolerance

    # ---- fix_norm = True ----
    w_tn, b2dn, s2dn = prepare_generator_params(weight, bias, fix_norm=True)
    out_fn = generator_forward(x, w_tn, b2dn, s2dn, out_size=vocab,
                               fix_norm=True)
    jax.block_until_ready(out_fn)
    ref_fn = _ref_forward_exact(x, weight, bias, fix_norm=True)
    assert jnp.max(jnp.abs(out_fn - ref_fn)) < 1e-3
    ref_fn32 = _ref_forward_f32(x, weight, bias, fix_norm=True)
    assert jnp.max(jnp.abs(out_fn - ref_fn32)) < 5e-2

    print("KERNEL_OK")
</pallas_src>

<mosaic_0001>
module attributes {stable_mosaic.version = 11 : i64} {
  func.func @_fused_generator_kernel(%arg0: i32, %arg1: i32, %arg2: memref<16x32xbf16, #tpu.memory_space<vmem>>, %arg3: memref<32x128xbf16, #tpu.memory_space<vmem>>, %arg4: memref<1x128xf32, #tpu.memory_space<vmem>>, %arg5: memref<16x128xf32, #tpu.memory_space<vmem>>, %arg6: memref<16x1xf32, #tpu.memory_space<vmem>>, %arg7: memref<16x1xf32, #tpu.memory_space<vmem>>) attributes {dimension_semantics = [#tpu.dimension_semantics<parallel>, #tpu.dimension_semantics<arbitrary>], iteration_bounds = array<i64: 1, 1>, scalar_prefetch = 0 : i64, scratch_operands = 2 : i64, tpu.core_type = #tpu.core_type<tc>, window_params = [{transform_indices = @transform_0, window_bounds = array<i64: 16, 32>}, {transform_indices = @transform_1, window_bounds = array<i64: 32, 128>}, {transform_indices = @transform_2, window_bounds = array<i64: 1, 128>}, {transform_indices = @transform_3, window_bounds = array<i64: 16, 128>}]} {
    %c0_i32 = arith.constant 0 : i32
    %0 = arith.cmpi eq, %arg1, %c0_i32 : i32
    %1 = arith.extui %0 : i1 to i32
    %c0_i32_0 = arith.constant 0 : i32
    %2 = arith.cmpi ne, %1, %c0_i32_0 : i32
    scf.if %2 {
      %cst_19 = arith.constant 0xFF800000 : f32
      %32 = vector.broadcast %cst_19 : f32 to vector<16x1xf32>
      %c0_20 = arith.constant 0 : index
      %c0_21 = arith.constant 0 : index
      %33 = vector.load %arg6[%c0_20, %c0_21] : memref<16x1xf32, #tpu.memory_space<vmem>>, vector<16x1xf32>
      tpu.vector_store %arg6[%c0_20, %c0_21], %32 {strides = array<i32>} : memref<16x1xf32, #tpu.memory_space<vmem>>, vector<16x1xf32>,
      %cst_22 = arith.constant 0.000000e+00 : f32
      %34 = vector.broadcast %cst_22 : f32 to vector<16x1xf32>
      %c0_23 = arith.constant 0 : index
      %c0_24 = arith.constant 0 : index
      %35 = vector.load %arg7[%c0_23, %c0_24] : memref<16x1xf32, #tpu.memory_space<vmem>>, vector<16x1xf32>
      tpu.vector_store %arg7[%c0_23, %c0_24], %34 {strides = array<i32>} : memref<16x1xf32, #tpu.memory_space<vmem>>, vector<16x1xf32>,
    } else {
    }
    %c0 = arith.constant 0 : index
    %c0_1 = arith.constant 0 : index
    %3 = vector.load %arg2[%c0, %c0_1] : memref<16x32xbf16, #tpu.memory_space<vmem>>, vector<16x32xbf16>
    %c0_2 = arith.constant 0 : index
    %c0_3 = arith.constant 0 : index
    %4 = vector.load %arg3[%c0_2, %c0_3] : memref<32x128xbf16, #tpu.memory_space<vmem>>, vector<32x128xbf16>
    %cst = arith.constant dense<0.000000e+00> : vector<16x128xf32>
    %5 = tpu.matmul %3, %4, %cst {dimension_numbers = #tpu.dot_dimension_numbers<[1], [0], [0], [1], [0, 0, 1, 1], [], []>} : vector<16x32xbf16>, vector<32x128xbf16>, vector<16x128xf32> -> vector<16x128xf32>
    %c0_4 = arith.constant 0 : index
    %c0_5 = arith.constant 0 : index
    %6 = vector.load %arg4[%c0_4, %c0_5] : memref<1x128xf32, #tpu.memory_space<vmem>>, vector<1x128xf32>
    %7 = vector.broadcast %6 : vector<1x128xf32> to vector<16x128xf32>
    %8 = arith.addf %5, %7 : vector<16x128xf32>
    %c128_i32 = arith.constant 128 : i32
    %9 = arith.muli %arg1, %c128_i32 : i32
    %10 = tpu.assume_multiple %9, 128 : i32
    %c0_6 = arith.constant 0 : index
    %11 = arith.index_cast %10 : i32 to index
    %12 = vector.load %arg5[%c0_6, %11] : memref<16x128xf32, #tpu.memory_space<vmem>>, vector<16x128xf32>
    tpu.vector_store %arg5[%c0_6, %11], %8 {strides = array<i32>} : memref<16x128xf32, #tpu.memory_space<vmem>>, vector<16x128xf32>,
    %c0_7 = arith.constant 0 : index
    %c0_8 = arith.constant 0 : index
    %13 = vector.load %arg6[%c0_7, %c0_8] : memref<16x1xf32, #tpu.memory_space<vmem>>, vector<16x1xf32>
    %cst_9 = arith.constant dense<0xFF800000> : vector<16xf32>
    %14 = vector.multi_reduction <maximumf>, %8, %cst_9 [1] : vector<16x128xf32> to vector<16xf32>
    %15 = vector.shape_cast %14 : vector<16xf32> to vector<16x1xf32>
    %16 = arith.maximumf %13, %15 : vector<16x1xf32>
    %c0_10 = arith.constant 0 : index
    %c0_11 = arith.constant 0 : index
    %17 = vector.load %arg7[%c0_10, %c0_11] : memref<16x1xf32, #tpu.memory_space<vmem>>, vector<16x1xf32>
    %18 = arith.subf %13, %16 : vector<16x1xf32>
    %19 = math.exp %18 : vector<16x1xf32>
    %20 = arith.mulf %17, %19 : vector<16x1xf32>
    %21 = vector.broadcast %16 : vector<16x1xf32> to vector<16x128xf32>
    %22 = arith.subf %8, %21 : vector<16x128xf32>
    %23 = math.exp %22 : vector<16x128xf32>
    %cst_12 = arith.constant dense<0.000000e+00> : vector<16xf32>
    %24 = vector.multi_reduction <add>, %23, %cst_12 [1] : vector<16x128xf32> to vector<16xf32>
    %25 = vector.shape_cast %24 : vector<16xf32> to vector<16x1xf32>
    %26 = arith.addf %20, %25 : vector<16x1xf32>
    %c0_13 = arith.constant 0 : index
    %c0_14 = arith.constant 0 : index
    %27 = vector.load %arg7[%c0_13, %c0_14] : memref<16x1xf32, #tpu.memory_space<vmem>>, vector<16x1xf32>
    tpu.vector_store %arg7[%c0_13, %c0_14], %26 {strides = array<i32>} : memref<16x1xf32, #tpu.memory_space<vmem>>, vector<16x1xf32>,
    %c0_15 = arith.constant 0 : index
    %c0_16 = arith.constant 0 : index
    %28 = vector.load %arg6[%c0_15, %c0_16] : memref<16x1xf32, #tpu.memory_space<vmem>>, vector<16x1xf32>
    tpu.vector_store %arg6[%c0_15, %c0_16], %16 {strides = array<i32>} : memref<16x1xf32, #tpu.memory_space<vmem>>, vector<16x1xf32>,
    %c0_i32_17 = arith.constant 0 : i32
    %29 = arith.cmpi eq, %arg1, %c0_i32_17 : i32
    %30 = arith.extui %29 : i1 to i32
    %c0_i32_18 = arith.constant 0 : i32
    %31 = arith.cmpi ne, %30, %c0_i32_18 : i32
    scf.if %31 {
      %c0_19 = arith.constant 0 : index
      %c0_20 = arith.constant 0 : index
      %32 = vector.load %arg5[%c0_19, %c0_20] : memref<16x128xf32, #tpu.memory_space<vmem>>, vector<16x128xf32>
      %c0_21 = arith.constant 0 : index
      %c0_22 = arith.constant 0 : index
      %33 = vector.load %arg6[%c0_21, %c0_22] : memref<16x1xf32, #tpu.memory_space<vmem>>, vector<16x1xf32>
      %c0_23 = arith.constant 0 : index
      %c0_24 = arith.constant 0 : index
      %34 = vector.load %arg7[%c0_23, %c0_24] : memref<16x1xf32, #tpu.memory_space<vmem>>, vector<16x1xf32>
      %35 = math.log %34 : vector<16x1xf32>
      %36 = arith.addf %33, %35 : vector<16x1xf32>
      %37 = vector.broadcast %36 : vector<16x1xf32> to vector<16x128xf32>
      %38 = arith.subf %32, %37 : vector<16x128xf32>
      %c0_25 = arith.constant 0 : index
      %c0_26 = arith.constant 0 : index
      %39 = vector.load %arg5[%c0_25, %c0_26] : memref<16x128xf32, #tpu.memory_space<vmem>>, vector<16x128xf32>
      tpu.vector_store %arg5[%c0_25, %c0_26], %38 {strides = array<i32>} : memref<16x128xf32, #tpu.memory_space<vmem>>, vector<16x128xf32>,
    } else {
    }
    return
  }
  func.func @transform_0(%arg0: i32, %arg1: i32) -> (i32, i32) {
    %c0_i32 = arith.constant 0 : i32
    %c0_i32_0 = arith.constant 0 : i32
    return %arg0, %c0_i32 : i32, i32
  }
  func.func @transform_1(%arg0: i32, %arg1: i32) -> (i32, i32) {
    %c0_i32 = arith.constant 0 : i32
    %c0_i32_0 = arith.constant 0 : i32
    return %c0_i32, %arg1 : i32, i32
  }
  func.func @transform_2(%arg0: i32, %arg1: i32) -> (i32, i32) {
    %c0_i32 = arith.constant 0 : i32
    %c0_i32_0 = arith.constant 0 : i32
    return %c0_i32, %arg1 : i32, i32
  }
  func.func @transform_3(%arg0: i32, %arg1: i32) -> (i32, i32) {
    %c0_i32 = arith.constant 0 : i32
    %c0_i32_0 = arith.constant 0 : i32
    return %arg0, %c0_i32 : i32, i32
  }
}

</mosaic_0001>

<llo_original>
// kernel: generator_forward.1
$region0: #{generator_forward.1}
  #allocation0 [shape = 'u32[]', space=smem, size = 0x4, offset = 0x4, fixed_abs, tag = 'smem constant byte address 0x4 - core index']
  #allocation1 [shape = 'u32[144,128]{1,0:T(1,128)}', space=vmem, size = 0x12000, scoped, tag = 'internal scratch']
  #allocation2 [shape = 'f32[16,1]{1,0:T(8,128)}', space=vmem, size = 0x2000, scoped, tag = 'scratch operand']
  #allocation3 [shape = 'f32[16,1]{1,0:T(8,128)}', space=vmem, size = 0x2000, scoped, tag = 'scratch operand']
  %s0 = inlined_call_operand.vmem [shape: bf16[16,32], index: 0, kind: input, shape index: {}]
  %s1 = inlined_call_operand.vmem [shape: bf16[32,128], index: 1, kind: input, shape index: {}]
  %s2 = inlined_call_operand.vmem [shape: f32[1,128], index: 2, kind: input, shape index: {}]
  %s3 = inlined_call_operand.hbm [shape: f32[16,128], index: 3, kind: output, shape index: {}]
  %s4 = sld [smem:[#allocation0]]
  $region30: #{generator_forward.1} parent=0
    _
  %s6 = ssub.s32 1, %s4
  %s7 = scalar_select 0, %s6, %s4
  $region1: #{generator_forward.1} parent=0
    #allocation4 [shape = 'u8[8192]{0}', space=vmem, size = 0x2000, scoped, tag = 'output window, operand 0, single buffered']
    #allocation5 [shape = 's32[1]{0}', space=sflag, size = 0x4, scoped, tag = 'scoped memory for generator_forward.1']
    %8 = vsyncpa [#allocation5], 0
    // Predicated region
    $region2: #{generator_forward.1} parent=1 // pred_check
      _
    $region3: #{generator_forward.1} parent=1 // pred_check_branch
      %10 = sbr.rel (0) target = $region5
    $region4: #{generator_forward.1} parent=1 // pred_region
      _
    $region5: #{generator_forward.1} parent=1 // pred_fallthru
      _
    // Predicated region
    $region6: #{generator_forward.1} parent=1 // pred_check
      _
    $region7: #{generator_forward.1} parent=1 // pred_check_branch
      %12 = sbr.rel (0) target = $region9
    $region8: #{generator_forward.1} parent=1 // pred_region
      _
    $region9: #{generator_forward.1} parent=1 // pred_fallthru
      _
    // Predicated region
    $region10: #{generator_forward.1} parent=1 // pred_check
      _
    $region11: #{generator_forward.1} parent=1 // pred_check_branch
      %14 = sbr.rel (0) target = $region13
    $region12: #{generator_forward.1} parent=1 // pred_region
      _
    $region13: #{generator_forward.1} parent=1 // pred_fallthru
      _
    %p16 = scmp.eq.s32.totalorder 0, 0
    // Predicated region
    $region14: #{generator_forward.1} parent=1 // pred_check
      %p17 = pneg %p16
    $region15: #{generator_forward.1} parent=1 // pred_check_branch
      %19 = sbr.rel (%p17) target = $region17
    $region16: #{generator_forward.1} parent=1 // pred_region
      %vm20 = vcmask 7168
      %21 = vst.msk [vmem:[#allocation2] sm:$0xff] %vm20, -inf
      %22 = vst.msk [vmem:[#allocation2 + $0x8] sm:$0xff] %vm20, -inf
      %23 = vst.msk [vmem:[#allocation3] sm:$0xff] %vm20, 0.0
      %24 = vst.msk [vmem:[#allocation3 + $0x8] sm:$0xff] %vm20, 0.0
    $region17: #{generator_forward.1} parent=1 // pred_fallthru
      _
    %v25 = vld [vmem:[%s0] sm:$0xf]
    %v26 = vld [vmem:[%s0 + $0x4] sm:$0xf]
    %v27 = vld [vmem:[%s1] sm:$0xf]
    %v28 = vld [vmem:[%s1 + $0x4] sm:$0xf]
    %v29 = vld [vmem:[%s1 + $0x8] sm:$0xf]
    %v30 = vld [vmem:[%s1 + $0xc] sm:$0xf]
    %v31 = vld [vmem:[%s2] sm:$0x1]
    %v33 = vlaneseq
    %v34 = vshrl.u32 %v33, 7
    %v35 = vsub.s32 0, %v34
    %v36 = vrot.slane %v31, %v35
    %v40 = vunpack.c.l.b16 %v25
    %v41 = vunpack.c.l.b16 %v26
    %v42 = vpack.c.b16 %v41, %v40
    %v47 = vunpack.c.l.b16 %v27
    %v48 = vunpack.c.l.b16 %v28
    %v49 = vunpack.c.l.b16 %v29
    %v50 = vunpack.c.l.b16 %v30
    %v51 = vpack.c.b16 %v48, %v47
    %v52 = vpack.c.b16 %v50, %v49
    %vm55 = vcmask 261120
    %v57 = vsel %vm55, %v42, 0
    %59 = vmatprep.subr.bf16.mxu0 0
    %60 = vmatpush1.bf16.msra.mxu0 %v51
    %61 = vmatprep.subr.bf16.mxu0 0
    %62 = vmatpush1.bf16.msra.mxu0 %v52
    %63 = vmatprep.subr.bf16.mxu0 0
    %64 = vmatpush1.bf16.msra.mxu0 0
    %65 = vmatprep.subr.bf16.mxu0 0
    %66 = vmatpush1.bf16.msra.mxu0 0
    %67 = vmatprep.subr.bf16.mxu0 0
    %68 = vmatpush1.bf16.msra.mxu0 0
    %69 = vmatprep.subr.bf16.mxu0 0
    %70 = vmatpush1.bf16.msra.mxu0 0
    %71 = vmatprep.subr.bf16.mxu0 0
    %72 = vmatpush1.bf16.msra.mxu0 0
    %73 = vmatprep.subr.bf16.mxu0 0
    %74 = vmatpush1.bf16.msra.mxu0 0
    %75 = vmatprep.subr.bf16.mxu0 0
    %76 = vmatpush1.bf16.msra.mxu0 0
    %77 = vmatprep.subr.bf16.mxu0 0
    %78 = vmatpush1.bf16.msra.mxu0 0
    %79 = vmatprep.subr.bf16.mxu0 0
    %80 = vmatpush1.bf16.msra.mxu0 0
    %81 = vmatprep.subr.bf16.mxu0 0
    %82 = vmatpush1.bf16.msra.mxu0 0
    %83 = vmatprep.subr.bf16.mxu0 0
    %84 = vmatpush1.bf16.msra.mxu0 0
    %85 = vmatprep.subr.bf16.mxu0 0
    %86 = vmatpush1.bf16.msra.mxu0 0
    %87 = vmatprep.subr.bf16.mxu0 0
    %88 = vmatpush1.bf16.msra.mxu0 0
    %89 = vmatprep.subr.bf16.mxu0 0
    %90 = vmatpush1.bf16.msra.mxu0 0
    %91 = vmatprep.mubr.bf16.mxu0 0
    %92 = vmatmul.mubr.bf16.gmra.mrb[0].mxu0 %v57
    %v93 = vpop.f32.mrb[0].mxu0
    %v94 = vadd.f32 %v36, %v93
    %v95 = vpop.f32.mrb[0].mxu0
    %v96 = vpop.f32.mrb[0].mxu0
    %v97 = vadd.f32 %v36, %v96
    %v98 = vpop.f32.mrb[0].mxu0
    %99 = vdwg.mxu0
    %s100 = smul.u32 0, 128
    %s101 = sshra.s32 %s100, 7
    %s102 = sand.u32 %s100, 127
    %s103 = scalar_lea.vmem [#allocation4], %s101
    %104 = vst [vmem:[%s103] sm:$0xff] %v94
    %105 = vst [vmem:[%s103 + $0x8] sm:$0xff] %v97
    %v106 = vld [vmem:[#allocation2] sm:$0xff]
    %v107 = vld [vmem:[#allocation2 + $0x8] sm:$0xff]
    %108 = vmax.xlane.f32.xlu0 %v94
    %v109 = vpop.xlane.xlu0 %108
    %110 = vmax.xlane.f32.xlu0 %v97
    %v111 = vpop.xlane.xlu0 %110
    %v112 = vmax.f32 %v106, %v109
    %v113 = vmax.f32 %v107, %v111
    %v114 = vld [vmem:[#allocation3] sm:$0xff]
    %v115 = vld [vmem:[#allocation3 + $0x8] sm:$0xff]
    %v116 = vsub.f32 %v106, %v112
    %v117 = vsub.f32 %v107, %v113
    %v118 = vmul.f32 %v116, 1.442695
    %v119 = vpow.pop %v118
    %v120 = vmul.f32 %v117, 1.442695
    %v121 = vpow.pop %v120
    %v122 = vmul.f32 %v114, %v119
    %v123 = vmul.f32 %v115, %v121
    %125 = vset.pattern.permute.xlu0 0
    %126 = vperm.xlu0 %125, %v112
    %v127 = vpop.permute.xlu0 %126
    %130 = vset.pattern.permute.xlu0 0
    %131 = vperm.xlu0 %130, %v113
    %v132 = vpop.permute.xlu0 %131
    %v134 = vsub.f32 %v94, %v127
    %v135 = vsub.f32 %v97, %v132
    %v136 = vmul.f32 %v134, 1.442695
    %v137 = vpow.pop %v136
    %v138 = vmul.f32 %v135, 1.442695
    %v139 = vpow.pop %v138
    %140 = vadd.xlane.f32.xlu0 %v137
    %v141 = vpop.xlane.xlu0 %140
    %142 = vadd.xlane.f32.xlu0 %v139
    %v143 = vpop.xlane.xlu0 %142
    %v144 = vadd.f32 %v122, %v141
    %v145 = vadd.f32 %v123, %v143
    %vm146 = vcmask 7168
    %147 = vst.msk [vmem:[#allocation3] sm:$0xff] %vm146, %v144
    %148 = vst.msk [vmem:[#allocation3 + $0x8] sm:$0xff] %vm146, %v145
    %149 = vst.msk [vmem:[#allocation2] sm:$0xff] %vm146, %v112
    %150 = vst.msk [vmem:[#allocation2 + $0x8] sm:$0xff] %vm146, %v113
    // Predicated region
    $region18: #{generator_forward.1} parent=1 // pred_check
      %p151 = pneg %p16
    $region19: #{generator_forward.1} parent=1 // pred_check_branch
      %153 = sbr.rel (%p151) target = $region21
    $region20: #{generator_forward.1} parent=1 // pred_region
      %v154 = vld [vmem:[#allocation4] sm:$0xff]
      %v155 = vld [vmem:[#allocation4 + $0x8] sm:$0xff]
      %v156 = vld [vmem:[#allocation2] sm:$0xff]
      %v157 = vld [vmem:[#allocation2 + $0x8] sm:$0xff]
      %v158 = vld [vmem:[#allocation3] sm:$0xff]
      %v159 = vld [vmem:[#allocation3 + $0x8] sm:$0xff]
      %v160 = vlog2.pop %v158
      %v161 = vmul.f32 %v160, 0.6931472
      %v162 = vlog2.pop %v159
      %v163 = vmul.f32 %v162, 0.6931472
      %v164 = vadd.f32 %v156, %v161
      %v165 = vadd.f32 %v157, %v163
      %167 = vset.pattern.permute.xlu0 0
      %168 = vperm.xlu0 %167, %v164
      %v169 = vpop.permute.xlu0 %168
      %172 = vset.pattern.permute.xlu0 0
      %173 = vperm.xlu0 %172, %v165
      %v174 = vpop.permute.xlu0 %173
      %v176 = vsub.f32 %v154, %v169
      %v177 = vsub.f32 %v155, %v174
      %178 = vst [vmem:[#allocation4] sm:$0xff] %v176
      %179 = vst [vmem:[#allocation4 + $0x8] sm:$0xff] %v177
    $region21: #{generator_forward.1} parent=1 // pred_fallthru
      _
    // Predicated region
    $region22: #{generator_forward.1} parent=1 // pred_check
      _
    $region23: #{generator_forward.1} parent=1 // pred_check_branch
      %181 = sbr.rel (0) target = $region25
    $region24: #{generator_forward.1} parent=1 // pred_region
      %s183 = ssub.s32 256, 256
      %184 = vsyncadd [#allocation5], %s183
      %s185 = sshll.u32 [#allocation4], 4
      %s186 = int_to_ptr.vmem [resolvable:$true] %s185
      %191 = dma.vmem_to_hbm [thread:$0]  %s186, 256, %s3, [#allocation5], 128, 128, 8
    $region25: #{generator_forward.1} parent=1 // pred_fallthru
      _
    // Predicated region
    $region26: #{generator_forward.1} parent=1 // pred_check
      _
    $region27: #{generator_forward.1} parent=1 // pred_check_branch
      %193 = sbr.rel (0) target = $region29
    $region28: #{generator_forward.1} parent=1 // pred_region
      %194 = dma.done [#allocation5], 256
    $region29: #{generator_forward.1} parent=1 // pred_fallthru
      _
    %195 = vsyncpa [#allocation5], 1

</llo_original>
